<compile_context>
chip_gen: v5e
topology: v5e:2x2
jax: 0.10.0
libtpu: 0.0.40
codegen_flags: <defaults>
</compile_context>

<pallas_src>
import jax
import jax.numpy as jnp
from jax.experimental import pallas as pl
from jax.experimental.pallas import tpu as pltpu


# ----------------------------------------------------------------------------
# helpers
# ----------------------------------------------------------------------------
def _round_up(x, m):
    return (x + m - 1) // m * m


def _pack_slab(pieces):
    """Pack a list of 2-D f32 arrays into one zero-padded slab.

    Rows of each piece start at a multiple of 8 (sublane aligned); the slab is
    as wide as the widest piece rounded up to 128 lanes.  Returns the slab and
    a static layout tuple of (row_offset, (rows, cols)) per piece.
    """
    cols = max(_round_up(p.shape[1], 128) for p in pieces)
    offs, total = [], 0
    for p in pieces:
        offs.append(total)
        total += _round_up(p.shape[0], 8)
    slab = jnp.zeros((total, cols), jnp.float32)
    for p, off in zip(pieces, offs):
        slab = slab.at[off:off + p.shape[0], :p.shape[1]].set(
            p.astype(jnp.float32))
    layout = tuple((off, tuple(p.shape)) for p, off in zip(pieces, offs))
    return slab, layout


# ----------------------------------------------------------------------------
# Pallas kernel: fused gather + MLP tower + affine head + sigmoid
# ----------------------------------------------------------------------------
def _make_neumf_kernel(layout, n_fc):
    """layout piece order:
       0: item_mlp_table^T  [latent, Vp]
       1: item_gmf_table^T  [dg, Vp]
       2+2l, 3+2l (l=0..n_fc-1): W_l [out,in], b_l [out,1]
         (layer 0 weight is the item half, bias has the user term folded in)
       2+2n_fc    : w_aff_mlp  [1, layers[-1]]
       2+2n_fc+1  : w_aff_gmf  [1, dg]
       2+2n_fc+2  : b_aff      [1, 1]
    """

    def kernel(idx_ref, slab_ref, out_ref):
        def piece(i):
            off, (r, c) = layout[i]
            return slab_ref[off:off + r, 0:c]

        tbl_mlp = piece(0)                      # [latent, Vp] f32
        tbl_gmf = piece(1)                      # [dg, Vp]     f32
        vp = tbl_mlp.shape[1]

        idx = idx_ref[...]                      # [1, TB] int32, batch on lanes
        tb = idx.shape[1]

        # one-hot gather on the MXU: onehot[v, b] = (idx[b] == v)
        iota = jax.lax.broadcasted_iota(jnp.int32, (vp, tb), 0)
        onehot = (iota == idx).astype(jnp.float32)           # [Vp, TB]
        x = jnp.dot(tbl_mlp, onehot,
                    preferred_element_type=jnp.float32)      # [latent, TB]
        gmf = jnp.dot(tbl_gmf, onehot,
                      preferred_element_type=jnp.float32)    # [dg, TB]

        # MLP tower (feature-major): x <- relu(W @ x + b)
        for l in range(n_fc):
            w = piece(2 + 2 * l)                # [out, in]
            b = piece(3 + 2 * l)                # [out, 1] -> broadcast on lanes
            x = jnp.maximum(
                jnp.dot(w, x, preferred_element_type=jnp.float32) + b, 0.0)

        w_am = piece(2 + 2 * n_fc)              # [1, layers[-1]]
        w_ag = piece(2 + 2 * n_fc + 1)          # [1, dg]
        b_a = piece(2 + 2 * n_fc + 2)           # [1, 1]

        # affine over concat([mlp, gmf]) == w_am@x + w_ag@gmf + b  -> [1, TB]
        logits = (jnp.dot(w_am, x, preferred_element_type=jnp.float32)
                  + jnp.dot(w_ag, gmf, preferred_element_type=jnp.float32)
                  + b_a)
        out_ref[...] = jax.nn.sigmoid(logits)   # lane-dense store

    return kernel


# ----------------------------------------------------------------------------
# forward wrapper
# ----------------------------------------------------------------------------
def light_neumf_forward(item_indices, params, config, *, max_tile=512):
    B = item_indices.shape[0]
    latent = config["latent_dim"]
    dg = config["latent_dim_gmf"]
    layers = config["layers"]
    num_items = config["num_items"]
    n_fc = len(params["fc_weights"])

    # ---- build the packed weight slab (constant w.r.t. the batch) ----------
    vp = _round_up(num_items, 128)
    tbl_mlp_t = jnp.zeros((latent, vp), jnp.float32).at[:, :num_items].set(
        params["embedding_item_mlp"].T)
    tbl_gmf_t = jnp.zeros((dg, vp), jnp.float32).at[:, :num_items].set(
        params["embedding_item_gmf"].T)

    pieces = [tbl_mlp_t, tbl_gmf_t]

    # layer 0: fold the constant user-embedding term into the bias and keep
    # only the item half of the weight -> no concat, no user stream.
    w1 = params["fc_weights"][0]                       # [out, 2*latent]
    b1 = params["fc_biases"][0]                        # [out]
    user_row = params["embedding_user_mlp"][0]         # [latent]
    w1_user = w1[:, :latent]
    w1_item = w1[:, latent:]
    b1_eff = w1_user @ user_row + b1                   # [out]
    pieces += [w1_item, b1_eff.reshape(-1, 1)]
    for l in range(1, n_fc):
        pieces += [params["fc_weights"][l],
                   params["fc_biases"][l].reshape(-1, 1)]

    # affine head: input order is concat([mlp_vector, gmf_vector])
    w_aff = params["w_affine"]                         # [1, layers[-1] + dg]
    pieces += [w_aff[:, :layers[-1]],                  # [1, layers[-1]]
               w_aff[:, layers[-1]:],                  # [1, dg]
               params["b_affine"].reshape(1, 1)]       # [1, 1]

    slab, layout = _pack_slab(pieces)

    # ---- batch tiling (batch lives on the lane axis) ------------------------
    tb = min(max_tile, _round_up(B, 128))
    b_pad = _round_up(B, tb)
    idx = jnp.zeros((b_pad,), jnp.int32).at[:B].set(
        item_indices.astype(jnp.int32)).reshape(1, b_pad)

    kernel = _make_neumf_kernel(layout, n_fc)

    out = pl.pallas_call(
        kernel,
        out_shape=jax.ShapeDtypeStruct((1, b_pad), jnp.float32),
        grid=(b_pad // tb,),
        in_specs=[
            pl.BlockSpec((1, tb), lambda i: (0, i)),        # indices: streamed
            pl.BlockSpec(slab.shape, lambda i: (0, 0)),     # slab: resident
        ],
        out_specs=pl.BlockSpec((1, tb), lambda i: (0, i)),  # lane-dense out
        compiler_params=pltpu.CompilerParams(
            dimension_semantics=("parallel",),
        ),
    )(idx, slab)

    return out[0, :B].reshape(B, 1)


# ----------------------------------------------------------------------------
# params (PyTorch-layout: Linear weight [out, in]) + pure-JAX reference
# ----------------------------------------------------------------------------
def make_params(key, config):
    num_items = config["num_items"]
    latent = config["latent_dim"]
    dg = config["latent_dim_gmf"]
    layers = config["layers"]

    keys = jax.random.split(key, 8 + 2 * len(layers))
    ki = iter(keys)

    def rnd(k, shape, scale=0.1):
        return (scale * jax.random.normal(k, shape)).astype(jnp.float32)

    params = {
        "embedding_item_gmf": rnd(next(ki), (num_items, dg)),
        "embedding_user_mlp": rnd(next(ki), (1, latent)),
        "embedding_item_mlp": rnd(next(ki), (num_items, latent)),
        "fc_weights": [],
        "fc_biases": [],
    }
    for in_size, out_size in zip(layers[:-1], layers[1:]):
        params["fc_weights"].append(rnd(next(ki), (out_size, in_size)))
        params["fc_biases"].append(rnd(next(ki), (out_size,)))
    params["w_affine"] = rnd(next(ki), (1, layers[-1] + dg))
    params["b_affine"] = rnd(next(ki), (1,))
    return params


def reference_forward(item_indices, params, config):
    """Pure-JAX mirror of the PyTorch forward."""
    B = item_indices.shape[0]
    latent = config["latent_dim"]
    user = jnp.broadcast_to(params["embedding_user_mlp"][0], (B, latent))
    item = params["embedding_item_mlp"][item_indices]
    x = jnp.concatenate([user, item], axis=-1)
    for w, b in zip(params["fc_weights"], params["fc_biases"]):
        x = jax.nn.relu(x @ w.T + b)
    gmf = params["embedding_item_gmf"][item_indices]
    vec = jnp.concatenate([x, gmf], axis=-1)
    logits = vec @ params["w_affine"].T + params["b_affine"]
    return jax.nn.sigmoid(logits)


if __name__ == "__main__":
    config = {
        "num_users": 1,
        "num_items": 100,
        "latent_dim": 8,
        "latent_dim_gmf": 8,
        "layers": [16, 32, 16, 8],   # layers[0] == 2 * latent_dim
    }

    key = jax.random.PRNGKey(0)
    pkey, ikey = jax.random.split(key)
    params = make_params(pkey, config)

    batch = 8
    item_indices = jax.random.randint(
        ikey, (batch,), 0, config["num_items"], dtype=jnp.int32)

    rating = light_neumf_forward(item_indices, params, config)
    rating = jax.block_until_ready(rating)

    ref = reference_forward(item_indices, params, config)
    assert rating.shape == (batch, 1)
    assert jnp.allclose(rating, ref, atol=1e-4, rtol=1e-4), (
        jnp.max(jnp.abs(rating - ref)))

    print("KERNEL_OK")
</pallas_src>

<mosaic_0001>
module attributes {stable_mosaic.version = 11 : i64} {
  func.func @kernel(%arg0: i32, %arg1: memref<1x128xi32, #tpu.memory_space<vmem>>, %arg2: memref<152x128xf32, #tpu.memory_space<vmem>>, %arg3: memref<1x128xf32, #tpu.memory_space<vmem>>) attributes {dimension_semantics = [#tpu.dimension_semantics<parallel>], iteration_bounds = array<i64: 1>, scalar_prefetch = 0 : i64, scratch_operands = 0 : i64, tpu.core_type = #tpu.core_type<tc>, window_params = [{transform_indices = @transform_0, window_bounds = array<i64: 1, 128>}, {pipeline_mode = #tpu.pipeline_mode<synchronous>, transform_indices = @transform_1, window_bounds = array<i64: 152, 128>}, {transform_indices = @transform_2, window_bounds = array<i64: 1, 128>}]} {
    %c0 = arith.constant 0 : index
    %c0_0 = arith.constant 0 : index
    %0 = vector.load %arg2[%c0, %c0_0] : memref<152x128xf32, #tpu.memory_space<vmem>>, vector<8x128xf32>
    %c8 = arith.constant 8 : index
    %c0_1 = arith.constant 0 : index
    %1 = vector.load %arg2[%c8, %c0_1] : memref<152x128xf32, #tpu.memory_space<vmem>>, vector<8x128xf32>
    %c0_2 = arith.constant 0 : index
    %c0_3 = arith.constant 0 : index
    %2 = vector.load %arg1[%c0_2, %c0_3] : memref<1x128xi32, #tpu.memory_space<vmem>>, vector<1x128xi32>
    %3 = tpu.iota {dimensions = array<i32: 0>} : vector<128x128xi32>
    %4 = vector.broadcast %2 : vector<1x128xi32> to vector<128x128xi32>
    %5 = arith.cmpi eq, %3, %4 : vector<128x128xi32>
    %6 = arith.extui %5 : vector<128x128xi1> to vector<128x128xi32>
    %7 = arith.sitofp %6 : vector<128x128xi32> to vector<128x128xf32>
    %cst = arith.constant dense<0.000000e+00> : vector<8x128xf32>
    %8 = tpu.matmul %0, %7, %cst {dimension_numbers = #tpu.dot_dimension_numbers<[1], [0], [0], [1], [0, 0, 1, 1], [], []>} : vector<8x128xf32>, vector<128x128xf32>, vector<8x128xf32> -> vector<8x128xf32>
    %cst_4 = arith.constant dense<0.000000e+00> : vector<8x128xf32>
    %9 = tpu.matmul %1, %7, %cst_4 {dimension_numbers = #tpu.dot_dimension_numbers<[1], [0], [0], [1], [0, 0, 1, 1], [], []>} : vector<8x128xf32>, vector<128x128xf32>, vector<8x128xf32> -> vector<8x128xf32>
    %c16 = arith.constant 16 : index
    %c0_5 = arith.constant 0 : index
    %10 = vector.load %arg2[%c16, %c0_5] : memref<152x128xf32, #tpu.memory_space<vmem>>, vector<32x8xf32>
    %c48 = arith.constant 48 : index
    %c0_6 = arith.constant 0 : index
    %11 = vector.load %arg2[%c48, %c0_6] : memref<152x128xf32, #tpu.memory_space<vmem>>, vector<32x1xf32>
    %cst_7 = arith.constant dense<0.000000e+00> : vector<32x128xf32>
    %12 = tpu.matmul %10, %8, %cst_7 {dimension_numbers = #tpu.dot_dimension_numbers<[1], [0], [0], [1], [0, 0, 1, 1], [], []>} : vector<32x8xf32>, vector<8x128xf32>, vector<32x128xf32> -> vector<32x128xf32>
    %13 = vector.broadcast %11 : vector<32x1xf32> to vector<32x128xf32>
    %14 = arith.addf %12, %13 : vector<32x128xf32>
    %cst_8 = arith.constant 0.000000e+00 : f32
    %15 = vector.broadcast %cst_8 : f32 to vector<32x128xf32>
    %16 = arith.maximumf %14, %15 : vector<32x128xf32>
    %c80 = arith.constant 80 : index
    %c0_9 = arith.constant 0 : index
    %17 = vector.load %arg2[%c80, %c0_9] : memref<152x128xf32, #tpu.memory_space<vmem>>, vector<16x32xf32>
    %c96 = arith.constant 96 : index
    %c0_10 = arith.constant 0 : index
    %18 = vector.load %arg2[%c96, %c0_10] : memref<152x128xf32, #tpu.memory_space<vmem>>, vector<16x1xf32>
    %cst_11 = arith.constant dense<0.000000e+00> : vector<16x128xf32>
    %19 = tpu.matmul %17, %16, %cst_11 {dimension_numbers = #tpu.dot_dimension_numbers<[1], [0], [0], [1], [0, 0, 1, 1], [], []>} : vector<16x32xf32>, vector<32x128xf32>, vector<16x128xf32> -> vector<16x128xf32>
    %20 = vector.broadcast %18 : vector<16x1xf32> to vector<16x128xf32>
    %21 = arith.addf %19, %20 : vector<16x128xf32>
    %cst_12 = arith.constant 0.000000e+00 : f32
    %22 = vector.broadcast %cst_12 : f32 to vector<16x128xf32>
    %23 = arith.maximumf %21, %22 : vector<16x128xf32>
    %c112 = arith.constant 112 : index
    %c0_13 = arith.constant 0 : index
    %24 = vector.load %arg2[%c112, %c0_13] : memref<152x128xf32, #tpu.memory_space<vmem>>, vector<8x16xf32>
    %c120 = arith.constant 120 : index
    %c0_14 = arith.constant 0 : index
    %25 = vector.load %arg2[%c120, %c0_14] : memref<152x128xf32, #tpu.memory_space<vmem>>, vector<8x1xf32>
    %cst_15 = arith.constant dense<0.000000e+00> : vector<8x128xf32>
    %26 = tpu.matmul %24, %23, %cst_15 {dimension_numbers = #tpu.dot_dimension_numbers<[1], [0], [0], [1], [0, 0, 1, 1], [], []>} : vector<8x16xf32>, vector<16x128xf32>, vector<8x128xf32> -> vector<8x128xf32>
    %27 = vector.broadcast %25 : vector<8x1xf32> to vector<8x128xf32>
    %28 = arith.addf %26, %27 : vector<8x128xf32>
    %cst_16 = arith.constant 0.000000e+00 : f32
    %29 = vector.broadcast %cst_16 : f32 to vector<8x128xf32>
    %30 = arith.maximumf %28, %29 : vector<8x128xf32>
    %c128 = arith.constant 128 : index
    %c0_17 = arith.constant 0 : index
    %31 = vector.load %arg2[%c128, %c0_17] : memref<152x128xf32, #tpu.memory_space<vmem>>, vector<1x8xf32>
    %c136 = arith.constant 136 : index
    %c0_18 = arith.constant 0 : index
    %32 = vector.load %arg2[%c136, %c0_18] : memref<152x128xf32, #tpu.memory_space<vmem>>, vector<1x8xf32>
    %c144 = arith.constant 144 : index
    %c0_19 = arith.constant 0 : index
    %33 = vector.load %arg2[%c144, %c0_19] : memref<152x128xf32, #tpu.memory_space<vmem>>, vector<1x1xf32>
    %cst_20 = arith.constant dense<0.000000e+00> : vector<1x128xf32>
    %34 = tpu.matmul %31, %30, %cst_20 {dimension_numbers = #tpu.dot_dimension_numbers<[1], [0], [0], [1], [0, 0, 1, 1], [], []>} : vector<1x8xf32>, vector<8x128xf32>, vector<1x128xf32> -> vector<1x128xf32>
    %cst_21 = arith.constant dense<0.000000e+00> : vector<1x128xf32>
    %35 = tpu.matmul %32, %9, %cst_21 {dimension_numbers = #tpu.dot_dimension_numbers<[1], [0], [0], [1], [0, 0, 1, 1], [], []>} : vector<1x8xf32>, vector<8x128xf32>, vector<1x128xf32> -> vector<1x128xf32>
    %36 = arith.addf %34, %35 : vector<1x128xf32>
    %37 = vector.broadcast %33 : vector<1x1xf32> to vector<1x128xf32>
    %38 = arith.addf %36, %37 : vector<1x128xf32>
    %39 = arith.negf %38 : vector<1x128xf32>
    %40 = math.exp %39 : vector<1x128xf32>
    %cst_22 = arith.constant 1.000000e+00 : f32
    %41 = vector.broadcast %cst_22 : f32 to vector<1x128xf32>
    %42 = arith.addf %41, %40 : vector<1x128xf32>
    %43 = arith.divf %41, %42 : vector<1x128xf32>
    %c0_23 = arith.constant 0 : index
    %c0_24 = arith.constant 0 : index
    %44 = vector.load %arg3[%c0_23, %c0_24] : memref<1x128xf32, #tpu.memory_space<vmem>>, vector<1x128xf32>
    tpu.vector_store %arg3[%c0_23, %c0_24], %43 {strides = array<i32>} : memref<1x128xf32, #tpu.memory_space<vmem>>, vector<1x128xf32>,
    return
  }
  func.func @transform_0(%arg0: i32) -> (i32, i32) {
    %c0_i32 = arith.constant 0 : i32
    %c0_i32_0 = arith.constant 0 : i32
    return %c0_i32, %arg0 : i32, i32
  }
  func.func @transform_1(%arg0: i32) -> (i32, i32) {
    %c0_i32 = arith.constant 0 : i32
    %c0_i32_0 = arith.constant 0 : i32
    %c0_i32_1 = arith.constant 0 : i32
    return %c0_i32, %c0_i32_0 : i32, i32
  }
  func.func @transform_2(%arg0: i32) -> (i32, i32) {
    %c0_i32 = arith.constant 0 : i32
    %c0_i32_0 = arith.constant 0 : i32
    return %c0_i32, %arg0 : i32, i32
  }
}

</mosaic_0001>

<llo_original>
// kernel: tpu_custom_call.1
$region0: #{tpu_custom_call.1}
  #allocation0 [shape = 'u32[]', space=smem, size = 0x4, offset = 0x4, fixed_abs, tag = 'smem constant byte address 0x4 - core index']
  #allocation1 [shape = 'u32[72,128]{1,0:T(1,128)}', space=vmem, size = 0x9000, scoped, tag = 'internal scratch']
  %s0 = inlined_call_operand.hbm [shape: s32[1,128], index: 0, kind: input, shape index: {}]
  %s1 = inlined_call_operand.hbm [shape: f32[152,128], index: 1, kind: input, shape index: {}]
  %s2 = inlined_call_operand.hbm [shape: f32[1,128], index: 2, kind: output, shape index: {}]
  %s3 = sld [smem:[#allocation0]]
  $region26: #{tpu_custom_call.1} parent=0
    _
  %s5 = ssub.s32 1, %s3
  %s6 = scalar_select 0, %s5, %s3
  $region1: #{tpu_custom_call.1} parent=0
    #allocation2 [shape = 'u8[512]{0}', space=vmem, size = 0x400, scoped, tag = 'input window, operand 0, single buffered']
    #allocation3 [shape = 's32[1]{0}', space=sflag, size = 0x4, scoped, tag = 'scoped memory for tpu_custom_call.1']
    #allocation4 [shape = 's32[1]{0}', space=sflag, size = 0x4, scoped, tag = 'scoped memory for tpu_custom_call.1']
    #allocation5 [shape = 'u8[77824]{0}', space=vmem, size = 0x13000, scoped, tag = 'input window, operand 1, single buffered']
    #allocation6 [shape = 's32[1]{0}', space=sflag, size = 0x4, scoped, tag = 'scoped memory for tpu_custom_call.1']
    #allocation7 [shape = 'u8[512]{0}', space=vmem, size = 0x400, scoped, tag = 'output window, operand 0, single buffered']
    %7 = vsyncpa [#allocation3], 0
    %8 = vsyncpa [#allocation6], 0
    %9 = vsyncpa [#allocation4], 0
    // Predicated region
    $region2: #{tpu_custom_call.1} parent=1 // pred_check
      _
    $region3: #{tpu_custom_call.1} parent=1 // pred_check_branch
      %11 = sbr.rel (0) target = $region5
    $region4: #{tpu_custom_call.1} parent=1 // pred_region
      %13 = vsyncadd [#allocation3], 0
      %s15 = sshll.u32 %s0, 4
      %s16 = int_to_ptr.hbm [resolvable:$true] %s15
      %s17 = sshll.u32 [#allocation2], 4
      %s18 = int_to_ptr.vmem [resolvable:$true] %s17
      %20 = dma.hbm_to_vmem [thread:$0]  %s16, 16, %s18, [#allocation3]
    $region5: #{tpu_custom_call.1} parent=1 // pred_fallthru
      _
    // Predicated region
    $region6: #{tpu_custom_call.1} parent=1 // pred_check
      _
    $region7: #{tpu_custom_call.1} parent=1 // pred_check_branch
      %22 = sbr.rel (0) target = $region9
    $region8: #{tpu_custom_call.1} parent=1 // pred_region
      %24 = vsyncadd [#allocation6], 0
      %s25 = sshll.u32 %s1, 4
      %s26 = int_to_ptr.hbm [resolvable:$true] %s25
      %s27 = sshll.u32 [#allocation5], 4
      %s28 = int_to_ptr.vmem [resolvable:$true] %s27
      %33 = dma.hbm_to_vmem [thread:$0]  %s26, 2432, %s28, [#allocation6], 128, 128, 8
    $region9: #{tpu_custom_call.1} parent=1 // pred_fallthru
      _
    // Predicated region
    $region10: #{tpu_custom_call.1} parent=1 // pred_check
      _
    $region11: #{tpu_custom_call.1} parent=1 // pred_check_branch
      %35 = sbr.rel (0) target = $region13
    $region12: #{tpu_custom_call.1} parent=1 // pred_region
      %37 = dma.done [#allocation3], 16
    $region13: #{tpu_custom_call.1} parent=1 // pred_fallthru
      _
    // Predicated region
    $region14: #{tpu_custom_call.1} parent=1 // pred_check
      _
    $region15: #{tpu_custom_call.1} parent=1 // pred_check_branch
      %39 = sbr.rel (0) target = $region17
    $region16: #{tpu_custom_call.1} parent=1 // pred_region
      %41 = dma.done [#allocation6], 2432
    $region17: #{tpu_custom_call.1} parent=1 // pred_fallthru
      _
    %v42 = vld [vmem:[#allocation5] sm:$0xff]
    %v43 = vld [vmem:[#allocation5 + $0x8] sm:$0xff]
    %v44 = vld [vmem:[#allocation2] sm:$0x1]
    %v45 = vlaneseq
    %v46 = vshrl.u32 %v45, 7
    %v47 = vadd.s32 %v46, 8
    %v48 = vadd.s32 %v46, 16
    %v49 = vadd.s32 %v46, 24
    %v50 = vadd.s32 %v46, 32
    %v51 = vadd.s32 %v46, 40
    %v52 = vadd.s32 %v46, 48
    %v53 = vadd.s32 %v46, 56
    %v54 = vadd.s32 %v46, 64
    %v55 = vadd.s32 %v46, 72
    %v56 = vadd.s32 %v46, 80
    %v57 = vadd.s32 %v46, 88
    %v58 = vadd.s32 %v46, 96
    %v59 = vadd.s32 %v46, 104
    %v60 = vadd.s32 %v46, 112
    %v61 = vadd.s32 %v46, 120
    %v62 = vperm.slane %v44, 0
    %vm63 = vcmp.eq.s32.totalorder %v46, %v62
    %vm64 = vcmp.eq.s32.totalorder %v47, %v62
    %vm65 = vcmp.eq.s32.totalorder %v48, %v62
    %vm66 = vcmp.eq.s32.totalorder %v49, %v62
    %vm67 = vcmp.eq.s32.totalorder %v50, %v62
    %vm68 = vcmp.eq.s32.totalorder %v51, %v62
    %vm69 = vcmp.eq.s32.totalorder %v52, %v62
    %vm70 = vcmp.eq.s32.totalorder %v53, %v62
    %vm71 = vcmp.eq.s32.totalorder %v54, %v62
    %vm72 = vcmp.eq.s32.totalorder %v55, %v62
    %vm73 = vcmp.eq.s32.totalorder %v56, %v62
    %vm74 = vcmp.eq.s32.totalorder %v57, %v62
    %vm75 = vcmp.eq.s32.totalorder %v58, %v62
    %vm76 = vcmp.eq.s32.totalorder %v59, %v62
    %vm77 = vcmp.eq.s32.totalorder %v60, %v62
    %vm78 = vcmp.eq.s32.totalorder %v61, %v62
    %v79 = vsel %vm63, 1, 0
    %v80 = vsel %vm64, 1, 0
    %v81 = vsel %vm65, 1, 0
    %v82 = vsel %vm66, 1, 0
    %v83 = vsel %vm67, 1, 0
    %v84 = vsel %vm68, 1, 0
    %v85 = vsel %vm69, 1, 0
    %v86 = vsel %vm70, 1, 0
    %v87 = vsel %vm71, 1, 0
    %v88 = vsel %vm72, 1, 0
    %v89 = vsel %vm73, 1, 0
    %v90 = vsel %vm74, 1, 0
    %v91 = vsel %vm75, 1, 0
    %v92 = vsel %vm76, 1, 0
    %v93 = vsel %vm77, 1, 0
    %v94 = vsel %vm78, 1, 0
    %v95 = vcvt.s32.f32 %v79
    %v96 = vcvt.s32.f32 %v80
    %v97 = vcvt.s32.f32 %v81
    %v98 = vcvt.s32.f32 %v82
    %v99 = vcvt.s32.f32 %v83
    %v100 = vcvt.s32.f32 %v84
    %v101 = vcvt.s32.f32 %v85
    %v102 = vcvt.s32.f32 %v86
    %v103 = vcvt.s32.f32 %v87
    %v104 = vcvt.s32.f32 %v88
    %v105 = vcvt.s32.f32 %v89
    %v106 = vcvt.s32.f32 %v90
    %v107 = vcvt.s32.f32 %v91
    %v108 = vcvt.s32.f32 %v92
    %v109 = vcvt.s32.f32 %v93
    %v110 = vcvt.s32.f32 %v94
    %111 = vmatpush.msra.mxu0 %v110
    %112 = vmatpush.msra.mxu0 %v109
    %113 = vmatpush.msra.mxu0 %v108
    %114 = vmatpush.msra.mxu0 %v107
    %115 = vmatpush.msra.mxu0 %v106
    %116 = vmatpush.msra.mxu0 %v105
    %117 = vmatpush.msra.mxu0 %v104
    %118 = vmatpush.msra.mxu0 %v103
    %119 = vmatpush.msra.mxu0 %v102
    %120 = vmatpush.msra.mxu0 %v101
    %121 = vmatpush.msra.mxu0 %v100
    %122 = vmatpush.msra.mxu0 %v99
    %123 = vmatpush.msra.mxu0 %v98
    %124 = vmatpush.msra.mxu0 %v97
    %125 = vmatpush.msra.mxu0 %v96
    %126 = vmatpush.msra.mxu0 %v95
    %127 = vmatmul.f32.gmra.mxu0 %v42
    %v128 = vpop.f32.mrf.mxu0
    %v129 = vadd.f32 0.0, %v128
    %130 = vdwg.mxu0
    %131 = vmatpush.msra.mxu0 %v110
    %132 = vmatpush.msra.mxu0 %v109
    %133 = vmatpush.msra.mxu0 %v108
    %134 = vmatpush.msra.mxu0 %v107
    %135 = vmatpush.msra.mxu0 %v106
    %136 = vmatpush.msra.mxu0 %v105
    %137 = vmatpush.msra.mxu0 %v104
    %138 = vmatpush.msra.mxu0 %v103
    %139 = vmatpush.msra.mxu0 %v102
    %140 = vmatpush.msra.mxu0 %v101
    %141 = vmatpush.msra.mxu0 %v100
    %142 = vmatpush.msra.mxu0 %v99
    %143 = vmatpush.msra.mxu0 %v98
    %144 = vmatpush.msra.mxu0 %v97
    %145 = vmatpush.msra.mxu0 %v96
    %146 = vmatpush.msra.mxu0 %v95
    %147 = vmatmul.f32.gmra.mxu0 %v43
    %v148 = vpop.f32.mrf.mxu0
    %v149 = vadd.f32 0.0, %v148
    %150 = vdwg.mxu0
    %v151 = vld [vmem:[#allocation5 + $0x10] sm:$0xff]
    %v152 = vld [vmem:[#allocation5 + $0x18] sm:$0xff]
    %v153 = vld [vmem:[#allocation5 + $0x20] sm:$0xff]
    %v154 = vld [vmem:[#allocation5 + $0x28] sm:$0xff]
    %v155 = vld [vmem:[#allocation5 + $0x30] sm:$0xff]
    %v156 = vld [vmem:[#allocation5 + $0x38] sm:$0xff]
    %v157 = vld [vmem:[#allocation5 + $0x40] sm:$0xff]
    %v158 = vld [vmem:[#allocation5 + $0x48] sm:$0xff]
    %160 = vset.pattern.permute.xlu0 0
    %161 = vperm.xlu0 %160, %v155
    %v162 = vpop.permute.xlu0 %161
    %165 = vset.pattern.permute.xlu0 0
    %166 = vperm.xlu0 %165, %v156
    %v167 = vpop.permute.xlu0 %166
    %170 = vset.pattern.permute.xlu0 0
    %171 = vperm.xlu0 %170, %v157
    %v172 = vpop.permute.xlu0 %171
    %175 = vset.pattern.permute.xlu0 0
    %176 = vperm.xlu0 %175, %v158
    %v177 = vpop.permute.xlu0 %176
    %vm179 = vcmask 64512
    %v181 = vsel %vm179, %v151, 0
    %v184 = vsel %vm179, %v152, 0
    %v187 = vsel %vm179, %v153, 0
    %v190 = vsel %vm179, %v154, 0
    %192 = vmatpush.msra.mxu0 0.0
    %193 = vmatpush.msra.mxu0 0.0
    %194 = vmatpush.msra.mxu0 0.0
    %195 = vmatpush.msra.mxu0 0.0
    %196 = vmatpush.msra.mxu0 0.0
    %197 = vmatpush.msra.mxu0 0.0
    %198 = vmatpush.msra.mxu0 0.0
    %199 = vmatpush.msra.mxu0 0.0
    %200 = vmatpush.msra.mxu0 0.0
    %201 = vmatpush.msra.mxu0 0.0
    %202 = vmatpush.msra.mxu0 0.0
    %203 = vmatpush.msra.mxu0 0.0
    %204 = vmatpush.msra.mxu0 0.0
    %205 = vmatpush.msra.mxu0 0.0
    %206 = vmatpush.msra.mxu0 0.0
    %207 = vmatpush.msra.mxu0 %v129
    %208 = vmatmul.f32.gmra.mxu0 %v181
    %v209 = vpop.f32.mrf.mxu0
    %v210 = vadd.f32 %v162, %v209
    %211 = vmatmul.f32.gmra.mxu0 %v184
    %v212 = vpop.f32.mrf.mxu0
    %v213 = vadd.f32 %v167, %v212
    %214 = vmatmul.f32.gmra.mxu0 %v187
    %v215 = vpop.f32.mrf.mxu0
    %v216 = vadd.f32 %v172, %v215
    %217 = vmatmul.f32.gmra.mxu0 %v190
    %v218 = vpop.f32.mrf.mxu0
    %v219 = vadd.f32 %v177, %v218
    %220 = vdwg.mxu0
    %v221 = vmax.f32 %v210, 0.0
    %v222 = vmax.f32 %v213, 0.0
    %v223 = vmax.f32 %v216, 0.0
    %v224 = vmax.f32 %v219, 0.0
    %v225 = vld [vmem:[#allocation5 + $0x50] sm:$0xff]
    %v226 = vld [vmem:[#allocation5 + $0x58] sm:$0xff]
    %v227 = vld [vmem:[#allocation5 + $0x60] sm:$0xff]
    %v228 = vld [vmem:[#allocation5 + $0x68] sm:$0xff]
    %230 = vset.pattern.permute.xlu0 0
    %231 = vperm.xlu0 %230, %v227
    %v232 = vpop.permute.xlu0 %231
    %235 = vset.pattern.permute.xlu0 0
    %236 = vperm.xlu0 %235, %v228
    %v237 = vpop.permute.xlu0 %236
    %vm239 = vcmask 261120
    %v241 = vsel %vm239, %v225, 0
    %v244 = vsel %vm239, %v226, 0
    %246 = vmatpush.msra.mxu0 0.0
    %247 = vmatpush.msra.mxu0 0.0
    %248 = vmatpush.msra.mxu0 0.0
    %249 = vmatpush.msra.mxu0 0.0
    %250 = vmatpush.msra.mxu0 0.0
    %251 = vmatpush.msra.mxu0 0.0
    %252 = vmatpush.msra.mxu0 0.0
    %253 = vmatpush.msra.mxu0 0.0
    %254 = vmatpush.msra.mxu0 0.0
    %255 = vmatpush.msra.mxu0 0.0
    %256 = vmatpush.msra.mxu0 0.0
    %257 = vmatpush.msra.mxu0 0.0
    %258 = vmatpush.msra.mxu0 %v224
    %259 = vmatpush.msra.mxu0 %v223
    %260 = vmatpush.msra.mxu0 %v222
    %261 = vmatpush.msra.mxu0 %v221
    %262 = vmatmul.f32.gmra.mxu0 %v241
    %v263 = vpop.f32.mrf.mxu0
    %v264 = vadd.f32 %v232, %v263
    %265 = vmatmul.f32.gmra.mxu0 %v244
    %v266 = vpop.f32.mrf.mxu0
    %v267 = vadd.f32 %v237, %v266
    %268 = vdwg.mxu0
    %v269 = vmax.f32 %v264, 0.0
    %v270 = vmax.f32 %v267, 0.0
    %v271 = vld [vmem:[#allocation5 + $0x70] sm:$0xff]
    %v272 = vld [vmem:[#allocation5 + $0x78] sm:$0xff]
    %274 = vset.pattern.permute.xlu0 0
    %275 = vperm.xlu0 %274, %v272
    %v276 = vpop.permute.xlu0 %275
    %vm278 = vcmask 130048
    %v280 = vsel %vm278, %v271, 0
    %282 = vmatpush.msra.mxu0 0.0
    %283 = vmatpush.msra.mxu0 0.0
    %284 = vmatpush.msra.mxu0 0.0
    %285 = vmatpush.msra.mxu0 0.0
    %286 = vmatpush.msra.mxu0 0.0
    %287 = vmatpush.msra.mxu0 0.0
    %288 = vmatpush.msra.mxu0 0.0
    %289 = vmatpush.msra.mxu0 0.0
    %290 = vmatpush.msra.mxu0 0.0
    %291 = vmatpush.msra.mxu0 0.0
    %292 = vmatpush.msra.mxu0 0.0
    %293 = vmatpush.msra.mxu0 0.0
    %294 = vmatpush.msra.mxu0 0.0
    %295 = vmatpush.msra.mxu0 0.0
    %296 = vmatpush.msra.mxu0 %v270
    %297 = vmatpush.msra.mxu0 %v269
    %298 = vmatmul.f32.gmra.mxu0 %v280
    %v299 = vpop.f32.mrf.mxu0
    %v300 = vadd.f32 %v276, %v299
    %301 = vdwg.mxu0
    %v302 = vmax.f32 %v300, 0.0
    %v303 = vld [vmem:[#allocation5 + $0x80] sm:$0x1]
    %v304 = vld [vmem:[#allocation5 + $0x88] sm:$0x1]
    %v305 = vld [vmem:[#allocation5 + $0x90] sm:$0x1]
    %v307 = vsel %vm179, %v304, 0
    %309 = vmatpush.msra.mxu0 0.0
    %310 = vmatpush.msra.mxu0 0.0
    %311 = vmatpush.msra.mxu0 0.0
    %312 = vmatpush.msra.mxu0 0.0
    %313 = vmatpush.msra.mxu0 0.0
    %314 = vmatpush.msra.mxu0 0.0
    %315 = vmatpush.msra.mxu0 0.0
    %316 = vmatpush.msra.mxu0 0.0
    %317 = vmatpush.msra.mxu0 0.0
    %318 = vmatpush.msra.mxu0 0.0
    %319 = vmatpush.msra.mxu0 0.0
    %320 = vmatpush.msra.mxu0 0.0
    %321 = vmatpush.msra.mxu0 0.0
    %322 = vmatpush.msra.mxu0 0.0
    %323 = vmatpush.msra.mxu0 0.0
    %324 = vmatpush.msra.mxu0 %v149
    %325 = vmatmul.f32.gmra.mxu0 %v307
    %v326 = vpop.f32.mrf.mxu0
    %v327 = vadd.f32 0.0, %v326
    %328 = vdwg.mxu0
    %v330 = vsel %vm179, %v303, 0
    %332 = vmatpush.msra.mxu0 0.0
    %333 = vmatpush.msra.mxu0 0.0
    %334 = vmatpush.msra.mxu0 0.0
    %335 = vmatpush.msra.mxu0 0.0
    %336 = vmatpush.msra.mxu0 0.0
    %337 = vmatpush.msra.mxu0 0.0
    %338 = vmatpush.msra.mxu0 0.0
    %339 = vmatpush.msra.mxu0 0.0
    %340 = vmatpush.msra.mxu0 0.0
    %341 = vmatpush.msra.mxu0 0.0
    %342 = vmatpush.msra.mxu0 0.0
    %343 = vmatpush.msra.mxu0 0.0
    %344 = vmatpush.msra.mxu0 0.0
    %345 = vmatpush.msra.mxu0 0.0
    %346 = vmatpush.msra.mxu0 0.0
    %347 = vmatpush.msra.mxu0 %v302
    %348 = vmatmul.f32.gmra.mxu0 %v330
    %v349 = vpop.f32.mrf.mxu0
    %v350 = vadd.f32 %v327, %v349
    %351 = vdwg.mxu0
    %353 = vset.pattern.permute.xlu0 0
    %354 = vperm.xlu0 %353, %v305
    %v355 = vpop.permute.xlu0 %354
    %v357 = vadd.f32 %v350, %v355
    %v358 = vxor.u32 %v357, 2147483648
    %v359 = vmul.f32 %v358, 1.442695
    %v360 = vpow.pop %v359
    %v361 = vadd.f32 %v360, 1.0
    %v362 = vrcp.pop %v361
    %v363 = vmul.f32 %v361, %v362
    %v364 = vsub.f32 1.0, %v363
    %v365 = vmul.f32 %v362, %v364
    %v366 = vadd.f32 %v362, %v365
    %vm367 = vweird.f32 %v361
    %vm368 = vweird.f32 %v362
    %vm369 = vmor %vm367, %vm368
    %v370 = vsel %vm369, %v362, %v366
    %v371 = vand.u32 2147483647, %v361
    %vm372 = vcmp.eq.f32.partialorder %v371, 8.507059e+37
    %v373 = vand.u32 %v361, 2147483648
    %v374 = vor.u32 1.1754944e-38, %v373
    %v375 = vsel %vm372, %v374, %v370
    %v376 = vmul.f32 1.0, %v375
    %377 = vst [vmem:[#allocation7] sm:$0x1] %v376
    // Predicated region
    $region18: #{tpu_custom_call.1} parent=1 // pred_check
      _
    $region19: #{tpu_custom_call.1} parent=1 // pred_check_branch
      %379 = sbr.rel (0) target = $region21
    $region20: #{tpu_custom_call.1} parent=1 // pred_region
      %381 = vsyncadd [#allocation4], 0
      %s383 = sshll.u32 [#allocation7], 4
      %s384 = int_to_ptr.vmem [resolvable:$true] %s383
      %s385 = sshll.u32 %s2, 4
      %s386 = int_to_ptr.hbm [resolvable:$true] %s385
      %388 = dma.vmem_to_hbm [thread:$0]  %s384, 16, %s386, [#allocation4]
    $region21: #{tpu_custom_call.1} parent=1 // pred_fallthru
      _
    // Predicated region
    $region22: #{tpu_custom_call.1} parent=1 // pred_check
      _
    $region23: #{tpu_custom_call.1} parent=1 // pred_check_branch
      %390 = sbr.rel (0) target = $region25
    $region24: #{tpu_custom_call.1} parent=1 // pred_region
      %392 = dma.done [#allocation4], 16
    $region25: #{tpu_custom_call.1} parent=1 // pred_fallthru
      _
    %393 = vsyncpa [#allocation3], 1
    %394 = vsyncpa [#allocation6], 1
    %395 = vsyncpa [#allocation4], 1

</llo_original>
